<compile_context>
chip_gen: v5e
topology: v5e:2x2
jax: 0.10.0
libtpu: 0.0.40
codegen_flags: <defaults>
</compile_context>

<pallas_src>
import functools

import jax
import jax.numpy as jnp
from jax.experimental import pallas as pl
from jax.experimental.pallas import tpu as pltpu


def _mha_kernel(q_ref, k_ref, v_ref,
                wqt_ref, bq_ref, wkt_ref, bk_ref, wvt_ref, bv_ref,
                mb_ref, out_ref, kT_sc, v_sc, *, num_head):
    # q_ref          : (1, tq, H) bf16 query tile for this (batch, q-tile)
    # k_ref / v_ref  : (1, S, H)  bf16 full-sequence key/value for this batch
    # w*t_ref        : (H, H)     bf16, already transposed (in, out)
    # b*_ref         : (1, H)     fp32
    # mb_ref         : (1, 1, S)  fp32 additive mask bias (0 or -1e10)
    # out_ref        : (1, tq, H) fp32
    # kT_sc          : (H, S)     bf16 scratch: projected K, pre-transposed
    # v_sc           : (S, H)     bf16 scratch: projected V
    H = out_ref.shape[2]
    Dh = H // num_head

    # K/V projection once per batch element (first query tile only), cached in
    # VMEM scratch.  Bias add in fp32, then a single bf16 cast; K is stored
    # transposed so per-head score matmuls are plain (tq,Dh)@(Dh,S) dots.
    @pl.when(pl.program_id(1) == 0)
    def _():
        Kb = (jnp.dot(k_ref[0], wkt_ref[...],
                      preferred_element_type=jnp.float32)
              + bk_ref[...]).astype(jnp.bfloat16)
        Vb = (jnp.dot(v_ref[0], wvt_ref[...],
                      preferred_element_type=jnp.float32)
              + bv_ref[...]).astype(jnp.bfloat16)
        kT_sc[...] = Kb.T          # one XLU transpose per batch block
        v_sc[...] = Vb

    # Query projection for this tile: fused bias add + bf16 cast, no fp32 copy
    # is kept live.
    Qb = (jnp.dot(q_ref[0], wqt_ref[...],
                  preferred_element_type=jnp.float32)
          + bq_ref[...]).astype(jnp.bfloat16)

    mb = mb_ref[0]                 # (1, S) fp32; broadcasts over query rows

    for h in range(num_head):      # static unroll; num_head is a Python int
        lo, hi = h * Dh, (h + 1) * Dh
        qh = Qb[:, lo:hi]          # (tq, Dh) bf16
        khT = kT_sc[lo:hi, :]      # (Dh, S)  bf16
        vh = v_sc[:, lo:hi]        # (S, Dh)  bf16

        # Raw attention scores (NO 1/sqrt(Dh) scaling -- matches the module),
        # fp32 accumulation, mask bias added in fp32.
        scores = jnp.dot(qh, khT, preferred_element_type=jnp.float32) + mb

        # softmax over the key axis (fp32 elementwise math, EUP reciprocal).
        m = jnp.max(scores, axis=-1, keepdims=True)
        p = jnp.exp(scores - m)
        p = p * pl.reciprocal(jnp.sum(p, axis=-1, keepdims=True), approx=True)

        # Per-head direct store (lane-dense when Dh is a multiple of 128).
        out_ref[0, :, lo:hi] = jnp.dot(
            p.astype(jnp.bfloat16), vh,
            preferred_element_type=jnp.float32).astype(out_ref.dtype)


def _pick_q_tile(seq_len, target=256):
    """Largest query tile <= target that divides S (multiple of 8 if tiled)."""
    if seq_len <= target:
        return seq_len
    for t in range(target, 7, -1):
        if seq_len % t == 0 and t % 8 == 0:
            return t
    return seq_len  # TODO(synk): pad/mask ragged query tiles instead


def multi_head_attention(query, key, value, params, num_head, mask=None):
    """query/key/value: (B, S, H) float32. mask: optional bool (B, S)."""
    B, S, H = query.shape
    assert H % num_head == 0

    tq = _pick_q_tile(S)
    nq = S // tq

    # bf16 activation I/O: halves HBM->VMEM DMA for the dominant traffic.
    q_b = query.astype(jnp.bfloat16)
    k_b = key.astype(jnp.bfloat16)
    v_b = value.astype(jnp.bfloat16)

    # x @ W^T == x @ W.T : pass the transposed weight once (bf16 for the MXU
    # and half the weight DMA traffic). Biases stay fp32.
    wqt = params["wq"].T.astype(jnp.bfloat16)
    wkt = params["wk"].T.astype(jnp.bfloat16)
    wvt = params["wv"].T.astype(jnp.bfloat16)
    bq = params["bq"].reshape(1, H).astype(jnp.float32)
    bk = params["bk"].reshape(1, H).astype(jnp.float32)
    bv = params["bv"].reshape(1, H).astype(jnp.float32)

    if mask is None:
        mask_bias = jnp.zeros((B, 1, S), dtype=jnp.float32)
    else:
        mask_bias = jnp.where(mask, 0.0, -10000000000.0).astype(jnp.float32)
        mask_bias = mask_bias.reshape(B, 1, S)

    # Explicit scoped-VMEM budget from the actual block math (double-buffered
    # inputs/outputs + resident weights + scratch + softmax temporaries),
    # clamped to v7x's 64 MiB physical VMEM.
    est = (
        2 * tq * H * 2                      # q tile, double-buffered, bf16
        + 2 * 2 * S * H * 2                 # k, v full-seq blocks, bf16
        + 2 * 3 * (H * H * 2 + H * 4)       # 3 weights (bf16) + biases (fp32)
        + 2 * 1 * S * 4                     # mask bias, fp32
        + 2 * tq * H * 4                    # output tile, fp32
        + 2 * S * H * 2                     # K^T / V VMEM scratch, bf16
        + 8 * tq * S * 4                    # scores / softmax temporaries
        + 4 * tq * H * 4                    # projected Q + misc temporaries
    )
    vmem_limit = int(min(max(est + (4 << 20), 32 << 20), 64 << 20))

    kernel = functools.partial(_mha_kernel, num_head=num_head)

    out = pl.pallas_call(
        kernel,
        out_shape=jax.ShapeDtypeStruct((B, S, H), jnp.float32),
        grid_spec=pltpu.PrefetchScalarGridSpec(
            num_scalar_prefetch=0,
            grid=(B, nq),
            in_specs=[
                pl.BlockSpec((1, tq, H), lambda b, qi: (b, qi, 0)),  # query tile
                pl.BlockSpec((1, S, H), lambda b, qi: (b, 0, 0)),    # key (full S)
                pl.BlockSpec((1, S, H), lambda b, qi: (b, 0, 0)),    # value (full S)
                pl.BlockSpec((H, H), lambda b, qi: (0, 0)),          # Wq^T (resident)
                pl.BlockSpec((1, H), lambda b, qi: (0, 0)),          # bq
                pl.BlockSpec((H, H), lambda b, qi: (0, 0)),          # Wk^T
                pl.BlockSpec((1, H), lambda b, qi: (0, 0)),          # bk
                pl.BlockSpec((H, H), lambda b, qi: (0, 0)),          # Wv^T
                pl.BlockSpec((1, H), lambda b, qi: (0, 0)),          # bv
                pl.BlockSpec((1, 1, S), lambda b, qi: (b, 0, 0)),    # mask bias
            ],
            out_specs=pl.BlockSpec((1, tq, H), lambda b, qi: (b, qi, 0)),
            scratch_shapes=[
                pltpu.VMEM((H, S), jnp.bfloat16),   # projected K, transposed
                pltpu.VMEM((S, H), jnp.bfloat16),   # projected V
            ],
        ),
        compiler_params=pltpu.CompilerParams(
            dimension_semantics=("parallel", "arbitrary"),
            vmem_limit_bytes=vmem_limit,
        ),
    )(q_b, k_b, v_b, wqt, bq, wkt, bk, wvt, bv, mask_bias)

    return out


def _reference_mha(query, key, value, params, num_head, mask=None):
    """Pure-JAX fp32 reference mirroring the PyTorch forward (eval dropout)."""
    B, S, H = query.shape
    Dh = H // num_head

    def lin(x, w, b):
        return x @ w.T + b

    q = lin(query, params["wq"], params["bq"]).reshape(B, S, num_head, Dh).transpose(0, 2, 1, 3)
    k = lin(key,   params["wk"], params["bk"]).reshape(B, S, num_head, Dh).transpose(0, 2, 1, 3)
    v = lin(value, params["wv"], params["bv"]).reshape(B, S, num_head, Dh).transpose(0, 2, 1, 3)
    scores = jnp.einsum("bhqd,bhkd->bhqk", q, k)
    if mask is not None:
        mb = jnp.where(mask, 0.0, -10000000000.0).astype(jnp.float32)
        scores = scores + mb[:, None, None, :]
    p = jax.nn.softmax(scores, axis=-1)
    o = jnp.einsum("bhqk,bhkd->bhqd", p, v)
    return o.transpose(0, 2, 1, 3).reshape(B, S, H)


def init_params(key, model_hidden):
    """Deterministic nn.Linear-style init: U(-1/sqrt(H), 1/sqrt(H))."""
    bound = 1.0 / (model_hidden ** 0.5)
    keys = jax.random.split(key, 6)

    def u(k, shape):
        return jax.random.uniform(k, shape, jnp.float32, -bound, bound)

    return {
        "wq": u(keys[0], (model_hidden, model_hidden)), "bq": u(keys[1], (model_hidden,)),
        "wk": u(keys[2], (model_hidden, model_hidden)), "bk": u(keys[3], (model_hidden,)),
        "wv": u(keys[4], (model_hidden, model_hidden)), "bv": u(keys[5], (model_hidden,)),
    }


if __name__ == "__main__":
    B, S, H, NH = 2, 8, 32, 4

    root = jax.random.PRNGKey(0)
    k_param, k_q, k_k, k_v, k_m = jax.random.split(root, 5)

    params = init_params(k_param, H)
    query = jax.random.normal(k_q, (B, S, H), jnp.float32)
    key_t = jax.random.normal(k_k, (B, S, H), jnp.float32)
    value = jax.random.normal(k_v, (B, S, H), jnp.float32)
    # boolean padding mask (B, S): True = attend, False = masked out
    mask = jax.random.bernoulli(k_m, 0.8, (B, S))
    mask = mask.at[:, 0].set(True)  # guarantee at least one valid key position

    fn = jax.jit(functools.partial(multi_head_attention, num_head=NH))

    # no-mask path (bf16 MXU operands/activations -> bf16-appropriate tolerances)
    out = jax.block_until_ready(fn(query, key_t, value, params, mask=None))
    ref = _reference_mha(query, key_t, value, params, NH, mask=None)
    assert out.shape == (B, S, H)
    assert jnp.allclose(out, ref, atol=5e-2, rtol=5e-2), (
        "mismatch (no mask), max abs err = %g" % float(jnp.max(jnp.abs(out - ref))))

    # masked path
    out_m = jax.block_until_ready(fn(query, key_t, value, params, mask=mask))
    ref_m = _reference_mha(query, key_t, value, params, NH, mask=mask)
    assert jnp.allclose(out_m, ref_m, atol=5e-2, rtol=5e-2), (
        "mismatch (mask), max abs err = %g" % float(jnp.max(jnp.abs(out_m - ref_m))))

    print("KERNEL_OK")
</pallas_src>

<mosaic_0001>
module attributes {stable_mosaic.version = 11 : i64} {
  func.func @_mha_kernel(%arg0: i32, %arg1: i32, %arg2: memref<1x8x32xbf16, #tpu.memory_space<vmem>>, %arg3: memref<1x8x32xbf16, #tpu.memory_space<vmem>>, %arg4: memref<1x8x32xbf16, #tpu.memory_space<vmem>>, %arg5: memref<32x32xbf16, #tpu.memory_space<vmem>>, %arg6: memref<1x32xf32, #tpu.memory_space<vmem>>, %arg7: memref<32x32xbf16, #tpu.memory_space<vmem>>, %arg8: memref<1x32xf32, #tpu.memory_space<vmem>>, %arg9: memref<32x32xbf16, #tpu.memory_space<vmem>>, %arg10: memref<1x32xf32, #tpu.memory_space<vmem>>, %arg11: memref<1x1x8xf32, #tpu.memory_space<vmem>>, %arg12: memref<1x8x32xf32, #tpu.memory_space<vmem>>, %arg13: memref<32x8xbf16, #tpu.memory_space<vmem>>, %arg14: memref<8x32xbf16, #tpu.memory_space<vmem>>) attributes {dimension_semantics = [#tpu.dimension_semantics<parallel>, #tpu.dimension_semantics<arbitrary>], iteration_bounds = array<i64: 2, 1>, scalar_prefetch = 0 : i64, scratch_operands = 2 : i64, tpu.core_type = #tpu.core_type<tc>, window_params = [{transform_indices = @transform_0, window_bounds = array<i64: 1, 8, 32>}, {transform_indices = @transform_1, window_bounds = array<i64: 1, 8, 32>}, {transform_indices = @transform_2, window_bounds = array<i64: 1, 8, 32>}, {pipeline_mode = #tpu.pipeline_mode<synchronous>, transform_indices = @transform_3, window_bounds = array<i64: 32, 32>}, {pipeline_mode = #tpu.pipeline_mode<synchronous>, transform_indices = @transform_4, window_bounds = array<i64: 1, 32>}, {pipeline_mode = #tpu.pipeline_mode<synchronous>, transform_indices = @transform_5, window_bounds = array<i64: 32, 32>}, {pipeline_mode = #tpu.pipeline_mode<synchronous>, transform_indices = @transform_6, window_bounds = array<i64: 1, 32>}, {pipeline_mode = #tpu.pipeline_mode<synchronous>, transform_indices = @transform_7, window_bounds = array<i64: 32, 32>}, {pipeline_mode = #tpu.pipeline_mode<synchronous>, transform_indices = @transform_8, window_bounds = array<i64: 1, 32>}, {transform_indices = @transform_9, window_bounds = array<i64: 1, 1, 8>}, {transform_indices = @transform_10, window_bounds = array<i64: 1, 8, 32>}]} {
    %c0_i32 = arith.constant 0 : i32
    %0 = arith.cmpi eq, %arg1, %c0_i32 : i32
    %1 = arith.extui %0 : i1 to i32
    %c0_i32_0 = arith.constant 0 : i32
    %2 = arith.cmpi ne, %1, %c0_i32_0 : i32
    scf.if %2 {
      %c0_51 = arith.constant 0 : index
      %c0_52 = arith.constant 0 : index
      %c0_53 = arith.constant 0 : index
      %97 = vector.load %arg3[%c0_51, %c0_52, %c0_53] : memref<1x8x32xbf16, #tpu.memory_space<vmem>>, vector<1x8x32xbf16>
      %98 = vector.shape_cast %97 : vector<1x8x32xbf16> to vector<8x32xbf16>
      %c0_54 = arith.constant 0 : index
      %c0_55 = arith.constant 0 : index
      %99 = vector.load %arg7[%c0_54, %c0_55] : memref<32x32xbf16, #tpu.memory_space<vmem>>, vector<32x32xbf16>
      %cst_56 = arith.constant dense<0.000000e+00> : vector<8x32xf32>
      %100 = tpu.matmul %98, %99, %cst_56 {dimension_numbers = #tpu.dot_dimension_numbers<[1], [0], [0], [1], [0, 0, 1, 1], [], []>} : vector<8x32xbf16>, vector<32x32xbf16>, vector<8x32xf32> -> vector<8x32xf32>
      %c0_57 = arith.constant 0 : index
      %c0_58 = arith.constant 0 : index
      %101 = vector.load %arg8[%c0_57, %c0_58] : memref<1x32xf32, #tpu.memory_space<vmem>>, vector<1x32xf32>
      %102 = vector.broadcast %101 : vector<1x32xf32> to vector<8x32xf32>
      %103 = arith.addf %100, %102 : vector<8x32xf32>
      %104 = arith.truncf %103 : vector<8x32xf32> to vector<8x32xbf16>
      %c0_59 = arith.constant 0 : index
      %c0_60 = arith.constant 0 : index
      %c0_61 = arith.constant 0 : index
      %105 = vector.load %arg4[%c0_59, %c0_60, %c0_61] : memref<1x8x32xbf16, #tpu.memory_space<vmem>>, vector<1x8x32xbf16>
      %106 = vector.shape_cast %105 : vector<1x8x32xbf16> to vector<8x32xbf16>
      %c0_62 = arith.constant 0 : index
      %c0_63 = arith.constant 0 : index
      %107 = vector.load %arg9[%c0_62, %c0_63] : memref<32x32xbf16, #tpu.memory_space<vmem>>, vector<32x32xbf16>
      %cst_64 = arith.constant dense<0.000000e+00> : vector<8x32xf32>
      %108 = tpu.matmul %106, %107, %cst_64 {dimension_numbers = #tpu.dot_dimension_numbers<[1], [0], [0], [1], [0, 0, 1, 1], [], []>} : vector<8x32xbf16>, vector<32x32xbf16>, vector<8x32xf32> -> vector<8x32xf32>
      %c0_65 = arith.constant 0 : index
      %c0_66 = arith.constant 0 : index
      %109 = vector.load %arg10[%c0_65, %c0_66] : memref<1x32xf32, #tpu.memory_space<vmem>>, vector<1x32xf32>
      %110 = vector.broadcast %109 : vector<1x32xf32> to vector<8x32xf32>
      %111 = arith.addf %108, %110 : vector<8x32xf32>
      %112 = arith.truncf %111 : vector<8x32xf32> to vector<8x32xbf16>
      %113 = tpu.transpose %104, [1, 0] : vector<8x32xbf16> -> vector<32x8xbf16>
      %c0_67 = arith.constant 0 : index
      %c0_68 = arith.constant 0 : index
      %114 = vector.load %arg13[%c0_67, %c0_68] : memref<32x8xbf16, #tpu.memory_space<vmem>>, vector<32x8xbf16>
      tpu.vector_store %arg13[%c0_67, %c0_68], %113 {strides = array<i32>} : memref<32x8xbf16, #tpu.memory_space<vmem>>, vector<32x8xbf16>,
      %c0_69 = arith.constant 0 : index
      %c0_70 = arith.constant 0 : index
      %115 = vector.load %arg14[%c0_69, %c0_70] : memref<8x32xbf16, #tpu.memory_space<vmem>>, vector<8x32xbf16>
      tpu.vector_store %arg14[%c0_69, %c0_70], %112 {strides = array<i32>} : memref<8x32xbf16, #tpu.memory_space<vmem>>, vector<8x32xbf16>,
    } else {
    }
    %c0 = arith.constant 0 : index
    %c0_1 = arith.constant 0 : index
    %c0_2 = arith.constant 0 : index
    %3 = vector.load %arg2[%c0, %c0_1, %c0_2] : memref<1x8x32xbf16, #tpu.memory_space<vmem>>, vector<1x8x32xbf16>
    %4 = vector.shape_cast %3 : vector<1x8x32xbf16> to vector<8x32xbf16>
    %c0_3 = arith.constant 0 : index
    %c0_4 = arith.constant 0 : index
    %5 = vector.load %arg5[%c0_3, %c0_4] : memref<32x32xbf16, #tpu.memory_space<vmem>>, vector<32x32xbf16>
    %cst = arith.constant dense<0.000000e+00> : vector<8x32xf32>
    %6 = tpu.matmul %4, %5, %cst {dimension_numbers = #tpu.dot_dimension_numbers<[1], [0], [0], [1], [0, 0, 1, 1], [], []>} : vector<8x32xbf16>, vector<32x32xbf16>, vector<8x32xf32> -> vector<8x32xf32>
    %c0_5 = arith.constant 0 : index
    %c0_6 = arith.constant 0 : index
    %7 = vector.load %arg6[%c0_5, %c0_6] : memref<1x32xf32, #tpu.memory_space<vmem>>, vector<1x32xf32>
    %8 = vector.broadcast %7 : vector<1x32xf32> to vector<8x32xf32>
    %9 = arith.addf %6, %8 : vector<8x32xf32>
    %10 = arith.truncf %9 : vector<8x32xf32> to vector<8x32xbf16>
    %c0_7 = arith.constant 0 : index
    %c0_8 = arith.constant 0 : index
    %c0_9 = arith.constant 0 : index
    %11 = vector.load %arg11[%c0_7, %c0_8, %c0_9] : memref<1x1x8xf32, #tpu.memory_space<vmem>>, vector<1x1x8xf32>
    %12 = vector.shape_cast %11 : vector<1x1x8xf32> to vector<1x8xf32>
    %13 = vector.extract_strided_slice %10 {offsets = [0, 0], sizes = [8, 8], strides = [1, 1]} : vector<8x32xbf16> to vector<8x8xbf16>
    %c0_10 = arith.constant 0 : index
    %c0_11 = arith.constant 0 : index
    %14 = vector.load %arg13[%c0_10, %c0_11] : memref<32x8xbf16, #tpu.memory_space<vmem>>, vector<8x8xbf16>
    %c0_12 = arith.constant 0 : index
    %c0_13 = arith.constant 0 : index
    %15 = vector.load %arg14[%c0_12, %c0_13] : memref<8x32xbf16, #tpu.memory_space<vmem>>, vector<8x8xbf16>
    %cst_14 = arith.constant dense<0.000000e+00> : vector<8x8xf32>
    %16 = tpu.matmul %13, %14, %cst_14 {dimension_numbers = #tpu.dot_dimension_numbers<[1], [0], [0], [1], [0, 0, 1, 1], [], []>} : vector<8x8xbf16>, vector<8x8xbf16>, vector<8x8xf32> -> vector<8x8xf32>
    %17 = vector.broadcast %12 : vector<1x8xf32> to vector<8x8xf32>
    %18 = arith.addf %16, %17 : vector<8x8xf32>
    %cst_15 = arith.constant dense<0xFF800000> : vector<8xf32>
    %19 = vector.multi_reduction <maximumf>, %18, %cst_15 [1] : vector<8x8xf32> to vector<8xf32>
    %20 = vector.shape_cast %19 : vector<8xf32> to vector<8x1xf32>
    %21 = vector.broadcast %20 : vector<8x1xf32> to vector<8x8xf32>
    %22 = arith.subf %18, %21 : vector<8x8xf32>
    %23 = math.exp %22 : vector<8x8xf32>
    %cst_16 = arith.constant dense<0.000000e+00> : vector<8xf32>
    %24 = vector.multi_reduction <add>, %23, %cst_16 [1] : vector<8x8xf32> to vector<8xf32>
    %25 = vector.shape_cast %24 : vector<8xf32> to vector<8x1xf32>
    %26 = tpu.reciprocal %25 {approx = true} : vector<8x1xf32> -> vector<8x1xf32>
    %27 = vector.broadcast %26 : vector<8x1xf32> to vector<8x8xf32>
    %28 = arith.mulf %23, %27 : vector<8x8xf32>
    %29 = arith.truncf %28 : vector<8x8xf32> to vector<8x8xbf16>
    %cst_17 = arith.constant dense<0.000000e+00> : vector<8x8xf32>
    %30 = tpu.matmul %29, %15, %cst_17 {dimension_numbers = #tpu.dot_dimension_numbers<[1], [0], [0], [1], [0, 0, 1, 1], [], []>} : vector<8x8xbf16>, vector<8x8xbf16>, vector<8x8xf32> -> vector<8x8xf32>
    %c0_18 = arith.constant 0 : index
    %c0_19 = arith.constant 0 : index
    %c0_20 = arith.constant 0 : index
    %31 = vector.load %arg12[%c0_18, %c0_19, %c0_20] : memref<1x8x32xf32, #tpu.memory_space<vmem>>, vector<1x8x8xf32>
    %32 = vector.shape_cast %31 : vector<1x8x8xf32> to vector<8x8xf32>
    %33 = vector.shape_cast %30 : vector<8x8xf32> to vector<1x8x8xf32>
    tpu.vector_store %arg12[%c0_18, %c0_19, %c0_20], %33 {strides = array<i32>} : memref<1x8x32xf32, #tpu.memory_space<vmem>>, vector<1x8x8xf32>,
    %34 = vector.extract_strided_slice %10 {offsets = [0, 8], sizes = [8, 8], strides = [1, 1]} : vector<8x32xbf16> to vector<8x8xbf16>
    %c8 = arith.constant 8 : index
    %c0_21 = arith.constant 0 : index
    %35 = vector.load %arg13[%c8, %c0_21] : memref<32x8xbf16, #tpu.memory_space<vmem>>, vector<8x8xbf16>
    %c0_22 = arith.constant 0 : index
    %c8_23 = arith.constant 8 : index
    %36 = vector.load %arg14[%c0_22, %c8_23] : memref<8x32xbf16, #tpu.memory_space<vmem>>, vector<8x8xbf16>
    %cst_24 = arith.constant dense<0.000000e+00> : vector<8x8xf32>
    %37 = tpu.matmul %34, %35, %cst_24 {dimension_numbers = #tpu.dot_dimension_numbers<[1], [0], [0], [1], [0, 0, 1, 1], [], []>} : vector<8x8xbf16>, vector<8x8xbf16>, vector<8x8xf32> -> vector<8x8xf32>
    %38 = vector.broadcast %12 : vector<1x8xf32> to vector<8x8xf32>
    %39 = arith.addf %37, %38 : vector<8x8xf32>
    %cst_25 = arith.constant dense<0xFF800000> : vector<8xf32>
    %40 = vector.multi_reduction <maximumf>, %39, %cst_25 [1] : vector<8x8xf32> to vector<8xf32>
    %41 = vector.shape_cast %40 : vector<8xf32> to vector<8x1xf32>
    %42 = vector.broadcast %41 : vector<8x1xf32> to vector<8x8xf32>
    %43 = arith.subf %39, %42 : vector<8x8xf32>
    %44 = math.exp %43 : vector<8x8xf32>
    %cst_26 = arith.constant dense<0.000000e+00> : vector<8xf32>
    %45 = vector.multi_reduction <add>, %44, %cst_26 [1] : vector<8x8xf32> to vector<8xf32>
    %46 = vector.shape_cast %45 : vector<8xf32> to vector<8x1xf32>
    %47 = tpu.reciprocal %46 {approx = true} : vector<8x1xf32> -> vector<8x1xf32>
    %48 = vector.broadcast %47 : vector<8x1xf32> to vector<8x8xf32>
    %49 = arith.mulf %44, %48 : vector<8x8xf32>
    %50 = arith.truncf %49 : vector<8x8xf32> to vector<8x8xbf16>
    %cst_27 = arith.constant dense<0.000000e+00> : vector<8x8xf32>
    %51 = tpu.matmul %50, %36, %cst_27 {dimension_numbers = #tpu.dot_dimension_numbers<[1], [0], [0], [1], [0, 0, 1, 1], [], []>} : vector<8x8xbf16>, vector<8x8xbf16>, vector<8x8xf32> -> vector<8x8xf32>
    %c0_28 = arith.constant 0 : index
    %c0_29 = arith.constant 0 : index
    %c8_30 = arith.constant 8 : index
    %52 = vector.load %arg12[%c0_28, %c0_29, %c8_30] : memref<1x8x32xf32, #tpu.memory_space<vmem>>, vector<1x8x8xf32>
    %53 = vector.shape_cast %52 : vector<1x8x8xf32> to vector<8x8xf32>
    %54 = vector.shape_cast %51 : vector<8x8xf32> to vector<1x8x8xf32>
    tpu.vector_store %arg12[%c0_28, %c0_29, %c8_30], %54 {strides = array<i32>} : memref<1x8x32xf32, #tpu.memory_space<vmem>>, vector<1x8x8xf32>,
    %55 = vector.extract_strided_slice %10 {offsets = [0, 16], sizes = [8, 8], strides = [1, 1]} : vector<8x32xbf16> to vector<8x8xbf16>
    %c16 = arith.constant 16 : index
    %c0_31 = arith.constant 0 : index
    %56 = vector.load %arg13[%c16, %c0_31] : memref<32x8xbf16, #tpu.memory_space<vmem>>, vector<8x8xbf16>
    %c0_32 = arith.constant 0 : index
    %c16_33 = arith.constant 16 : index
    %57 = vector.load %arg14[%c0_32, %c16_33] : memref<8x32xbf16, #tpu.memory_space<vmem>>, vector<8x8xbf16>
    %cst_34 = arith.constant dense<0.000000e+00> : vector<8x8xf32>
    %58 = tpu.matmul %55, %56, %cst_34 {dimension_numbers = #tpu.dot_dimension_numbers<[1], [0], [0], [1], [0, 0, 1, 1], [], []>} : vector<8x8xbf16>, vector<8x8xbf16>, vector<8x8xf32> -> vector<8x8xf32>
    %59 = vector.broadcast %12 : vector<1x8xf32> to vector<8x8xf32>
    %60 = arith.addf %58, %59 : vector<8x8xf32>
    %cst_35 = arith.constant dense<0xFF800000> : vector<8xf32>
    %61 = vector.multi_reduction <maximumf>, %60, %cst_35 [1] : vector<8x8xf32> to vector<8xf32>
    %62 = vector.shape_cast %61 : vector<8xf32> to vector<8x1xf32>
    %63 = vector.broadcast %62 : vector<8x1xf32> to vector<8x8xf32>
    %64 = arith.subf %60, %63 : vector<8x8xf32>
    %65 = math.exp %64 : vector<8x8xf32>
    %cst_36 = arith.constant dense<0.000000e+00> : vector<8xf32>
    %66 = vector.multi_reduction <add>, %65, %cst_36 [1] : vector<8x8xf32> to vector<8xf32>
    %67 = vector.shape_cast %66 : vector<8xf32> to vector<8x1xf32>
    %68 = tpu.reciprocal %67 {approx = true} : vector<8x1xf32> -> vector<8x1xf32>
    %69 = vector.broadcast %68 : vector<8x1xf32> to vector<8x8xf32>
    %70 = arith.mulf %65, %69 : vector<8x8xf32>
    %71 = arith.truncf %70 : vector<8x8xf32> to vector<8x8xbf16>
    %cst_37 = arith.constant dense<0.000000e+00> : vector<8x8xf32>
    %72 = tpu.matmul %71, %57, %cst_37 {dimension_numbers = #tpu.dot_dimension_numbers<[1], [0], [0], [1], [0, 0, 1, 1], [], []>} : vector<8x8xbf16>, vector<8x8xbf16>, vector<8x8xf32> -> vector<8x8xf32>
    %c0_38 = arith.constant 0 : index
    %c0_39 = arith.constant 0 : index
    %c16_40 = arith.constant 16 : index
    %73 = vector.load %arg12[%c0_38, %c0_39, %c16_40] : memref<1x8x32xf32, #tpu.memory_space<vmem>>, vector<1x8x8xf32>
    %74 = vector.shape_cast %73 : vector<1x8x8xf32> to vector<8x8xf32>
    %75 = vector.shape_cast %72 : vector<8x8xf32> to vector<1x8x8xf32>
    tpu.vector_store %arg12[%c0_38, %c0_39, %c16_40], %75 {strides = array<i32>} : memref<1x8x32xf32, #tpu.memory_space<vmem>>, vector<1x8x8xf32>,
    %76 = vector.extract_strided_slice %10 {offsets = [0, 24], sizes = [8, 8], strides = [1, 1]} : vector<8x32xbf16> to vector<8x8xbf16>
    %c24 = arith.constant 24 : index
    %c0_41 = arith.constant 0 : index
    %77 = vector.load %arg13[%c24, %c0_41] : memref<32x8xbf16, #tpu.memory_space<vmem>>, vector<8x8xbf16>
    %c0_42 = arith.constant 0 : index
    %c24_43 = arith.constant 24 : index
    %78 = vector.load %arg14[%c0_42, %c24_43] : memref<8x32xbf16, #tpu.memory_space<vmem>>, vector<8x8xbf16>
    %cst_44 = arith.constant dense<0.000000e+00> : vector<8x8xf32>
    %79 = tpu.matmul %76, %77, %cst_44 {dimension_numbers = #tpu.dot_dimension_numbers<[1], [0], [0], [1], [0, 0, 1, 1], [], []>} : vector<8x8xbf16>, vector<8x8xbf16>, vector<8x8xf32> -> vector<8x8xf32>
    %80 = vector.broadcast %12 : vector<1x8xf32> to vector<8x8xf32>
    %81 = arith.addf %79, %80 : vector<8x8xf32>
    %cst_45 = arith.constant dense<0xFF800000> : vector<8xf32>
    %82 = vector.multi_reduction <maximumf>, %81, %cst_45 [1] : vector<8x8xf32> to vector<8xf32>
    %83 = vector.shape_cast %82 : vector<8xf32> to vector<8x1xf32>
    %84 = vector.broadcast %83 : vector<8x1xf32> to vector<8x8xf32>
    %85 = arith.subf %81, %84 : vector<8x8xf32>
    %86 = math.exp %85 : vector<8x8xf32>
    %cst_46 = arith.constant dense<0.000000e+00> : vector<8xf32>
    %87 = vector.multi_reduction <add>, %86, %cst_46 [1] : vector<8x8xf32> to vector<8xf32>
    %88 = vector.shape_cast %87 : vector<8xf32> to vector<8x1xf32>
    %89 = tpu.reciprocal %88 {approx = true} : vector<8x1xf32> -> vector<8x1xf32>
    %90 = vector.broadcast %89 : vector<8x1xf32> to vector<8x8xf32>
    %91 = arith.mulf %86, %90 : vector<8x8xf32>
    %92 = arith.truncf %91 : vector<8x8xf32> to vector<8x8xbf16>
    %cst_47 = arith.constant dense<0.000000e+00> : vector<8x8xf32>
    %93 = tpu.matmul %92, %78, %cst_47 {dimension_numbers = #tpu.dot_dimension_numbers<[1], [0], [0], [1], [0, 0, 1, 1], [], []>} : vector<8x8xbf16>, vector<8x8xbf16>, vector<8x8xf32> -> vector<8x8xf32>
    %c0_48 = arith.constant 0 : index
    %c0_49 = arith.constant 0 : index
    %c24_50 = arith.constant 24 : index
    %94 = vector.load %arg12[%c0_48, %c0_49, %c24_50] : memref<1x8x32xf32, #tpu.memory_space<vmem>>, vector<1x8x8xf32>
    %95 = vector.shape_cast %94 : vector<1x8x8xf32> to vector<8x8xf32>
    %96 = vector.shape_cast %93 : vector<8x8xf32> to vector<1x8x8xf32>
    tpu.vector_store %arg12[%c0_48, %c0_49, %c24_50], %96 {strides = array<i32>} : memref<1x8x32xf32, #tpu.memory_space<vmem>>, vector<1x8x8xf32>,
    return
  }
  func.func @transform_0(%arg0: i32, %arg1: i32) -> (i32, i32, i32) {
    %c0_i32 = arith.constant 0 : i32
    %c0_i32_0 = arith.constant 0 : i32
    return %arg0, %arg1, %c0_i32 : i32, i32, i32
  }
  func.func @transform_1(%arg0: i32, %arg1: i32) -> (i32, i32, i32) {
    %c0_i32 = arith.constant 0 : i32
    %c0_i32_0 = arith.constant 0 : i32
    %c0_i32_1 = arith.constant 0 : i32
    return %arg0, %c0_i32, %c0_i32_0 : i32, i32, i32
  }
  func.func @transform_2(%arg0: i32, %arg1: i32) -> (i32, i32, i32) {
    %c0_i32 = arith.constant 0 : i32
    %c0_i32_0 = arith.constant 0 : i32
    %c0_i32_1 = arith.constant 0 : i32
    return %arg0, %c0_i32, %c0_i32_0 : i32, i32, i32
  }
  func.func @transform_3(%arg0: i32, %arg1: i32) -> (i32, i32) {
    %c0_i32 = arith.constant 0 : i32
    %c0_i32_0 = arith.constant 0 : i32
    %c0_i32_1 = arith.constant 0 : i32
    return %c0_i32, %c0_i32_0 : i32, i32
  }
  func.func @transform_4(%arg0: i32, %arg1: i32) -> (i32, i32) {
    %c0_i32 = arith.constant 0 : i32
    %c0_i32_0 = arith.constant 0 : i32
    %c0_i32_1 = arith.constant 0 : i32
    return %c0_i32, %c0_i32_0 : i32, i32
  }
  func.func @transform_5(%arg0: i32, %arg1: i32) -> (i32, i32) {
    %c0_i32 = arith.constant 0 : i32
    %c0_i32_0 = arith.constant 0 : i32
    %c0_i32_1 = arith.constant 0 : i32
    return %c0_i32, %c0_i32_0 : i32, i32
  }
  func.func @transform_6(%arg0: i32, %arg1: i32) -> (i32, i32) {
    %c0_i32 = arith.constant 0 : i32
    %c0_i32_0 = arith.constant 0 : i32
    %c0_i32_1 = arith.constant 0 : i32
    return %c0_i32, %c0_i32_0 : i32, i32
  }
  func.func @transform_7(%arg0: i32, %arg1: i32) -> (i32, i32) {
    %c0_i32 = arith.constant 0 : i32
    %c0_i32_0 = arith.constant 0 : i32
    %c0_i32_1 = arith.constant 0 : i32
    return %c0_i32, %c0_i32_0 : i32, i32
  }
  func.func @transform_8(%arg0: i32, %arg1: i32) -> (i32, i32) {
    %c0_i32 = arith.constant 0 : i32
    %c0_i32_0 = arith.constant 0 : i32
    %c0_i32_1 = arith.constant 0 : i32
    return %c0_i32, %c0_i32_0 : i32, i32
  }
  func.func @transform_9(%arg0: i32, %arg1: i32) -> (i32, i32, i32) {
    %c0_i32 = arith.constant 0 : i32
    %c0_i32_0 = arith.constant 0 : i32
    %c0_i32_1 = arith.constant 0 : i32
    return %arg0, %c0_i32, %c0_i32_0 : i32, i32, i32
  }
  func.func @transform_10(%arg0: i32, %arg1: i32) -> (i32, i32, i32) {
    %c0_i32 = arith.constant 0 : i32
    %c0_i32_0 = arith.constant 0 : i32
    return %arg0, %arg1, %c0_i32 : i32, i32, i32
  }
}

</mosaic_0001>

<llo_original>
// kernel: multi_head_attention.1
$region0: #{multi_head_attention.1}
  #allocation0 [shape = 'u32[]', space=smem, size = 0x4, offset = 0x4, fixed_abs, tag = 'smem constant byte address 0x4 - core index']
  #allocation1 [shape = 'u32[72,128]{1,0:T(1,128)}', space=vmem, size = 0x9000, scoped, tag = 'internal scratch']
  #allocation2 [shape = 'bf16[32,8]{1,0:T(8,128)(2,1)}', space=vmem, size = 0x2000, scoped, tag = 'scratch operand']
  #allocation3 [shape = 'bf16[8,32]{1,0:T(8,128)(2,1)}', space=vmem, size = 0x800, scoped, tag = 'scratch operand']
  %s0 = inlined_call_operand.vmem [shape: bf16[2,8,32], index: 0, kind: input, shape index: {}]
  %s1 = inlined_call_operand.vmem [shape: bf16[2,8,32], index: 1, kind: input, shape index: {}]
  %s2 = inlined_call_operand.vmem [shape: bf16[2,8,32], index: 2, kind: input, shape index: {}]
  %s3 = inlined_call_operand.vmem [shape: bf16[32,32], index: 3, kind: input, shape index: {}]
  %s4 = inlined_call_operand.vmem [shape: f32[1,32], index: 4, kind: input, shape index: {}]
  %s5 = inlined_call_operand.vmem [shape: bf16[32,32], index: 5, kind: input, shape index: {}]
  %s6 = inlined_call_operand.vmem [shape: f32[1,32], index: 6, kind: input, shape index: {}]
  %s7 = inlined_call_operand.vmem [shape: bf16[32,32], index: 7, kind: input, shape index: {}]
  %s8 = inlined_call_operand.vmem [shape: f32[1,32], index: 8, kind: input, shape index: {}]
  %s9 = inlined_call_operand.vmem [shape: f32[2,1,8], index: 9, kind: input, shape index: {}]
  %s10 = inlined_call_operand.hbm [shape: f32[2,8,32], index: 10, kind: output, shape index: {}]
  %s11 = sld [smem:[#allocation0]]
  $region77: #{multi_head_attention.1} parent=0
    _
  %s13 = ssub.s32 1, %s11
  %s14 = scalar_select 0, %s13, %s11
  $region1: #{multi_head_attention.1} parent=0
    #allocation4 [shape = 'u8[8192]{0}', space=vmem, size = 0x2000, scoped, tag = 'output window, operand 0']
    #allocation5 [shape = 's32[2]{0}', space=sflag, size = 0x8, scoped, tag = 'scoped memory for multi_head_attention.1']
    %15 = vsyncpa [#allocation5], 0
    %s16 = scalar_lea.sflag [#allocation5], 1
    %17 = vsyncpa %s16, 0
    loop: start=0, step=1, limit=4
    $region2: #{multi_head_attention.1} parent=1 // loop_pre_header
      _
    $region3: #{multi_head_attention.1} parent=1 // loop_header
      %s19 = sphi 0, %s23
      %p20 = scmp.ge.s32.totalorder %s19, 4
      %s26 = sphi 0, %s38
      %s27 = sphi 0, %s34
      %s28 = sphi 0, %s26
      %s29 = sphi 0, %s27
      %s30 = sphi 0, %s28
      %s31 = sphi 0, %s29
      %s43 = sphi 0, %s45
      %s46 = sphi 0, %s43
      %s47 = sphi 0, %s46
      %s63 = sphi 0, %s47
      %s69 = sphi 0, %s71
      %s72 = sphi 0, %s69
      %s73 = sphi 0, %s72
      %s89 = sphi 0, %s73
      %s95 = sphi 0, %s97
      %s98 = sphi 0, %s95
      %s99 = sphi 0, %s98
      %s115 = sphi 0, %s99
      %s119 = sphi 0, %s119
      %s121 = sphi 0, %s119
      %s122 = sphi 0, %s121
      %s136 = sphi 0, %s122
      %s140 = sphi 0, %s140
      %s142 = sphi 0, %s140
      %s143 = sphi 0, %s142
      %s157 = sphi 0, %s143
      %s161 = sphi 0, %s161
      %s163 = sphi 0, %s161
      %s164 = sphi 0, %s163
      %s178 = sphi 0, %s164
      %s182 = sphi 0, %s182
      %s184 = sphi 0, %s182
      %s185 = sphi 0, %s184
      %s199 = sphi 0, %s185
      %s203 = sphi 0, %s203
      %s205 = sphi 0, %s203
      %s206 = sphi 0, %s205
      %s220 = sphi 0, %s206
      %s224 = sphi 0, %s224
      %s226 = sphi 0, %s224
      %s227 = sphi 0, %s226
      %s241 = sphi 0, %s227
      %s247 = sphi 0, %s249
      %s250 = sphi 0, %s247
      %s251 = sphi 0, %s250
      %s267 = sphi 0, %s251
      %s275 = sphi 0, %s277
      %s278 = sphi 0, %s275
      %s279 = sphi 0, %s278
      %s295 = sphi 0, %s279
    $region4: #{multi_head_attention.1} parent=1 // loop_header_branch
      %22 = sbr.rel (%p20) target = $region8
    $region5: #{multi_head_attention.1} parent=1 // loop_body
      %s24 = ssub.s32 %s19, 1
      %s25 = ssub.s32 %s19, 2
      %s32 = sadd.s32 1, %s27
      %p33 = scmp.ge.s32.totalorder %s32, 1
      %s34 = scalar_select %p33, 0, %s32
      %s35 = sadd.s32 1, %s26
      %s36 = scalar_select %p33, %s35, %s26
      %p37 = scmp.ge.s32.totalorder %s36, 2
      %s38 = scalar_select %p37, 0, %s36
      %s39 = ssub.s32 %s26, %s38
      %s40 = ssub.s32 %s27, %s34
      %s41 = sor.u32 %s39, %s40
      %p42 = scmp.eq.s32.totalorder %s41, 0
      %s44 = sadd.s32 %s43, 1
      %s45 = scalar_select %p42, %s43, %s44
      %p48 = pneg %p42
      %p49 = scmp.eq.s32.totalorder %s19, 1
      %p50 = por %p48, %p49
      %p51 = scmp.ne.s32.totalorder %s43, %s46
      %p52 = scmp.eq.s32.totalorder %s19, 0
      %p53 = por %p51, %p52
      %p54 = scmp.ne.s32.totalorder %s43, %s46
      %p55 = scmp.eq.s32.totalorder %s24, 1
      %p56 = por %p54, %p55
      %p57 = scmp.ne.s32.totalorder %s46, %s47
      %p58 = scmp.eq.s32.totalorder %s24, 0
      %p59 = por %p57, %p58
      %p60 = scmp.ne.s32.totalorder %s46, %s47
      %p61 = scmp.eq.s32.totalorder %s25, 1
      %p62 = por %p60, %p61
      %p64 = scmp.ne.s32.totalorder %s47, %s63
      %p65 = scmp.eq.s32.totalorder %s25, 0
      %p66 = por %p64, %p65
      %s67 = ssub.s32 %s26, %s38
      %p68 = scmp.eq.s32.totalorder %s67, 0
      %s70 = sadd.s32 %s69, 1
      %s71 = scalar_select %p68, %s69, %s70
      %p74 = pneg %p68
      %p75 = scmp.eq.s32.totalorder %s19, 1
      %p76 = por %p74, %p75
      %p77 = scmp.ne.s32.totalorder %s69, %s72
      %p78 = scmp.eq.s32.totalorder %s19, 0
      %p79 = por %p77, %p78
      %p80 = scmp.ne.s32.totalorder %s69, %s72
      %p81 = scmp.eq.s32.totalorder %s24, 1
      %p82 = por %p80, %p81
      %p83 = scmp.ne.s32.totalorder %s72, %s73
      %p84 = scmp.eq.s32.totalorder %s24, 0
      %p85 = por %p83, %p84
      %p86 = scmp.ne.s32.totalorder %s72, %s73
      %p87 = scmp.eq.s32.totalorder %s25, 1
      %p88 = por %p86, %p87
      %p90 = scmp.ne.s32.totalorder %s73, %s89
      %p91 = scmp.eq.s32.totalorder %s25, 0
      %p92 = por %p90, %p91
      %s93 = ssub.s32 %s26, %s38
      %p94 = scmp.eq.s32.totalorder %s93, 0
      %s96 = sadd.s32 %s95, 1
      %s97 = scalar_select %p94, %s95, %s96
      %p100 = pneg %p94
      %p101 = scmp.eq.s32.totalorder %s19, 1
      %p102 = por %p100, %p101
      %p103 = scmp.ne.s32.totalorder %s95, %s98
      %p104 = scmp.eq.s32.totalorder %s19, 0
      %p105 = por %p103, %p104
      %p106 = scmp.ne.s32.totalorder %s95, %s98
      %p107 = scmp.eq.s32.totalorder %s24, 1
      %p108 = por %p106, %p107
      %p109 = scmp.ne.s32.totalorder %s98, %s99
      %p110 = scmp.eq.s32.totalorder %s24, 0
      %p111 = por %p109, %p110
      %p112 = scmp.ne.s32.totalorder %s98, %s99
      %p113 = scmp.eq.s32.totalorder %s25, 1
      %p114 = por %p112, %p113
      %p116 = scmp.ne.s32.totalorder %s99, %s115
      %p117 = scmp.eq.s32.totalorder %s25, 0
      %p118 = por %p116, %p117
      %s120 = sadd.s32 %s119, 1
      %p123 = scmp.eq.s32.totalorder %s19, 1
      %p124 = scmp.ne.s32.totalorder %s119, %s121
      %p125 = scmp.eq.s32.totalorder %s19, 0
      %p126 = por %p124, %p125
      %p127 = scmp.ne.s32.totalorder %s119, %s121
      %p128 = scmp.eq.s32.totalorder %s24, 1
      %p129 = por %p127, %p128
      %p130 = scmp.ne.s32.totalorder %s121, %s122
      %p131 = scmp.eq.s32.totalorder %s24, 0
      %p132 = por %p130, %p131
      %p133 = scmp.ne.s32.totalorder %s121, %s122
      %p134 = scmp.eq.s32.totalorder %s25, 1
      %p135 = por %p133, %p134
      %p137 = scmp.ne.s32.totalorder %s122, %s136
      %p138 = scmp.eq.s32.totalorder %s25, 0
      %p139 = por %p137, %p138
      %s141 = sadd.s32 %s140, 1
      %p144 = scmp.eq.s32.totalorder %s19, 1
      %p145 = scmp.ne.s32.totalorder %s140, %s142
      %p146 = scmp.eq.s32.totalorder %s19, 0
      %p147 = por %p145, %p146
      %p148 = scmp.ne.s32.totalorder %s140, %s142
      %p149 = scmp.eq.s32.totalorder %s24, 1
      %p150 = por %p148, %p149
      %p151 = scmp.ne.s32.totalorder %s142, %s143
      %p152 = scmp.eq.s32.totalorder %s24, 0
      %p153 = por %p151, %p152
      %p154 = scmp.ne.s32.totalorder %s142, %s143
      %p155 = scmp.eq.s32.totalorder %s25, 1
      %p156 = por %p154, %p155
      %p158 = scmp.ne.s32.totalorder %s143, %s157
      %p159 = scmp.eq.s32.totalorder %s25, 0
      %p160 = por %p158, %p159
      %s162 = sadd.s32 %s161, 1
      %p165 = scmp.eq.s32.totalorder %s19, 1
      %p166 = scmp.ne.s32.totalorder %s161, %s163
      %p167 = scmp.eq.s32.totalorder %s19, 0
      %p168 = por %p166, %p167
      %p169 = scmp.ne.s32.totalorder %s161, %s163
      %p170 = scmp.eq.s32.totalorder %s24, 1
      %p171 = por %p169, %p170
      %p172 = scmp.ne.s32.totalorder %s163, %s164
      %p173 = scmp.eq.s32.totalorder %s24, 0
      %p174 = por %p172, %p173
      %p175 = scmp.ne.s32.totalorder %s163, %s164
      %p176 = scmp.eq.s32.totalorder %s25, 1
      %p177 = por %p175, %p176
      %p179 = scmp.ne.s32.totalorder %s164, %s178
      %p180 = scmp.eq.s32.totalorder %s25, 0
      %p181 = por %p179, %p180
      %s183 = sadd.s32 %s182, 1
      %p186 = scmp.eq.s32.totalorder %s19, 1
      %p187 = scmp.ne.s32.totalorder %s182, %s184
      %p188 = scmp.eq.s32.totalorder %s19, 0
      %p189 = por %p187, %p188
      %p190 = scmp.ne.s32.totalorder %s182, %s184
      %p191 = scmp.eq.s32.totalorder %s24, 1
      %p192 = por %p190, %p191
      %p193 = scmp.ne.s32.totalorder %s184, %s185
      %p194 = scmp.eq.s32.totalorder %s24, 0
      %p195 = por %p193, %p194
      %p196 = scmp.ne.s32.totalorder %s184, %s185
      %p197 = scmp.eq.s32.totalorder %s25, 1
      %p198 = por %p196, %p197
      %p200 = scmp.ne.s32.totalorder %s185, %s199
      %p201 = scmp.eq.s32.totalorder %s25, 0
      %p202 = por %p200, %p201
      %s204 = sadd.s32 %s203, 1
      %p207 = scmp.eq.s32.totalorder %s19, 1
      %p208 = scmp.ne.s32.totalorder %s203, %s205
      %p209 = scmp.eq.s32.totalorder %s19, 0
      %p210 = por %p208, %p209
      %p211 = scmp.ne.s32.totalorder %s203, %s205
      %p212 = scmp.eq.s32.totalorder %s24, 1
      %p213 = por %p211, %p212
      %p214 = scmp.ne.s32.totalorder %s205, %s206
      %p215 = scmp.eq.s32.totalorder %s24, 0
      %p216 = por %p214, %p215
      %p217 = scmp.ne.s32.totalorder %s205, %s206
      %p218 = scmp.eq.s32.totalorder %s25, 1
      %p219 = por %p217, %p218
      %p221 = scmp.ne.s32.totalorder %s206, %s220
      %p222 = scmp.eq.s32.totalorder %s25, 0
      %p223 = por %p221, %p222
      %s225 = sadd.s32 %s224, 1
      %p228 = scmp.eq.s32.totalorder %s19, 1
      %p229 = scmp.ne.s32.totalorder %s224, %s226
      %p230 = scmp.eq.s32.totalorder %s19, 0
      %p231 = por %p229, %p230
      %p232 = scmp.ne.s32.totalorder %s224, %s226
      %p233 = scmp.eq.s32.totalorder %s24, 1
      %p234 = por %p232, %p233
      %p235 = scmp.ne.s32.totalorder %s226, %s227
      %p236 = scmp.eq.s32.totalorder %s24, 0
      %p237 = por %p235, %p236
      %p238 = scmp.ne.s32.totalorder %s226, %s227
      %p239 = scmp.eq.s32.totalorder %s25, 1
      %p240 = por %p238, %p239
      %p242 = scmp.ne.s32.totalorder %s227, %s241
      %p243 = scmp.eq.s32.totalorder %s25, 0
      %p244 = por %p242, %p243
      %s245 = ssub.s32 %s26, %s38
      %p246 = scmp.eq.s32.totalorder %s245, 0
      %s248 = sadd.s32 %s247, 1
      %s249 = scalar_select %p246, %s247, %s248
      %p252 = pneg %p246
      %p253 = scmp.eq.s32.totalorder %s19, 1
      %p254 = por %p252, %p253
      %p255 = scmp.ne.s32.totalorder %s247, %s250
      %p256 = scmp.eq.s32.totalorder %s19, 0
      %p257 = por %p255, %p256
      %p258 = scmp.ne.s32.totalorder %s247, %s250
      %p259 = scmp.eq.s32.totalorder %s24, 1
      %p260 = por %p258, %p259
      %p261 = scmp.ne.s32.totalorder %s250, %s251
      %p262 = scmp.eq.s32.totalorder %s24, 0
      %p263 = por %p261, %p262
      %p264 = scmp.ne.s32.totalorder %s250, %s251
      %p265 = scmp.eq.s32.totalorder %s25, 1
      %p266 = por %p264, %p265
      %p268 = scmp.ne.s32.totalorder %s251, %s267
      %p269 = scmp.eq.s32.totalorder %s25, 0
      %p270 = por %p268, %p269
      %s271 = ssub.s32 %s26, %s38
      %s272 = ssub.s32 %s27, %s34
      %s273 = sor.u32 %s271, %s272
      %p274 = scmp.eq.s32.totalorder %s273, 0
      %s276 = sadd.s32 %s275, 1
      %s277 = scalar_select %p274, %s275, %s276
      %p280 = pneg %p274
      %p281 = scmp.eq.s32.totalorder %s19, 1
      %p282 = por %p280, %p281
      %p283 = scmp.ne.s32.totalorder %s275, %s278
      %p284 = scmp.eq.s32.totalorder %s19, 0
      %p285 = por %p283, %p284
      %p286 = scmp.ne.s32.totalorder %s275, %s278
      %p287 = scmp.eq.s32.totalorder %s24, 1
      %p288 = por %p286, %p287
      %p289 = scmp.ne.s32.totalorder %s278, %s279
      %p290 = scmp.eq.s32.totalorder %s24, 0
      %p291 = por %p289, %p290
      %p292 = scmp.ne.s32.totalorder %s278, %s279
      %p293 = scmp.eq.s32.totalorder %s25, 1
      %p294 = por %p292, %p293
      %p296 = scmp.ne.s32.totalorder %s279, %s295
      %p297 = scmp.eq.s32.totalorder %s25, 0
      %p298 = por %p296, %p297
      %p299 = scmp.le.s32.totalorder 1, %s19
      %p300 = scmp.lt.s32.totalorder %s19, 3
      %p301 = pnand %p299, %p300
      %p302 = pneg %p301
      // Predicated region
      $region9: #{multi_head_attention.1} parent=5 // pred_check
        _
      $region10: #{multi_head_attention.1} parent=5 // pred_check_branch
        %304 = sbr.rel (%p301) target = $region12
      $region11: #{multi_head_attention.1} parent=5 // pred_region
        %s305 = ssub.s32 %s19, 1
        // Predicated region
        $region13: #{multi_head_attention.1} parent=11 // pred_check
          %p306 = pneg %p132
        $region14: #{multi_head_attention.1} parent=11 // pred_check_branch
          %308 = sbr.rel (%p306) target = $region16
        $region15: #{multi_head_attention.1} parent=11 // pred_region
          _
        $region16: #{multi_head_attention.1} parent=11 // pred_fallthru
          _
        // Predicated region
        $region17: #{multi_head_attention.1} parent=11 // pred_check
          %p309 = pneg %p153
        $region18: #{multi_head_attention.1} parent=11 // pred_check_branch
          %311 = sbr.rel (%p309) target = $region20
        $region19: #{multi_head_attention.1} parent=11 // pred_region
          _
        $region20: #{multi_head_attention.1} parent=11 // pred_fallthru
          _
        // Predicated region
        $region21: #{multi_head_attention.1} parent=11 // pred_check
          %p312 = pneg %p174
        $region22: #{multi_head_attention.1} parent=11 // pred_check_branch
          %314 = sbr.rel (%p312) target = $region24
        $region23: #{multi_head_attention.1} parent=11 // pred_region
          _
        $region24: #{multi_head_attention.1} parent=11 // pred_fallthru
          _
        // Predicated region
        $region25: #{multi_head_attention.1} parent=11 // pred_check
          %p315 = pneg %p195
        $region26: #{multi_head_attention.1} parent=11 // pred_check_branch
          %317 = sbr.rel (%p315) target = $region28
        $region27: #{multi_head_attention.1} parent=11 // pred_region
          _
        $region28: #{multi_head_attention.1} parent=11 // pred_fallthru
          _
        // Predicated region
        $region29: #{multi_head_attention.1} parent=11 // pred_check
          %p318 = pneg %p216
        $region30: #{multi_head_attention.1} parent=11 // pred_check_branch
          %320 = sbr.rel (%p318) target = $region32
        $region31: #{multi_head_attention.1} parent=11 // pred_region
          _
        $region32: #{multi_head_attention.1} parent=11 // pred_fallthru
          _
        // Predicated region
        $region33: #{multi_head_attention.1} parent=11 // pred_check
          %p321 = pneg %p237
        $region34: #{multi_head_attention.1} parent=11 // pred_check_branch
          %323 = sbr.rel (%p321) target = $region36
        $region35: #{multi_head_attention.1} parent=11 // pred_region
          _
        $region36: #{multi_head_attention.1} parent=11 // pred_fallthru
          _
      $region12: #{multi_head_attention.1} parent=5 // pred_fallthru
        _
      %p324 = scmp.lt.s32.totalorder %s19, 2
      // Predicated region
      $region37: #{multi_head_attention.1} parent=5 // pred_check
        %p325 = pneg %p324
      $region38: #{multi_head_attention.1} parent=5 // pred_check_branch
        %327 = sbr.rel (%p325) target = $region40
      $region39: #{multi_head_attention.1} parent=5 // pred_region
        // Predicated region
        $region41: #{multi_head_attention.1} parent=39 // pred_check
          %p328 = pneg %p53
        $region42: #{multi_head_attention.1} parent=39 // pred_check_branch
          %330 = sbr.rel (%p328) target = $region44
        $region43: #{multi_head_attention.1} parent=39 // pred_region
          %p331 = scmp.lt.s32.totalorder %s26, 1
          %s332 = scalar_select %p331, %s26, 1
          %p333 = scmp.lt.s32.totalorder %s27, 0
          %s334 = scalar_select %p333, %s27, 0
          %s335 = sadd.s32 %s334, %s332
          %s336 = smul.addr %s335, 4
          %s337 = scalar_lea.vmem %s0, %s336
        $region44: #{multi_head_attention.1} parent=39 // pred_fallthru
          _
        // Predicated region
        $region45: #{multi_head_attention.1} parent=39 // pred_check
          %p338 = pneg %p79
        $region46: #{multi_head_attention.1} parent=39 // pred_check_branch
          %340 = sbr.rel (%p338) target = $region48
        $region47: #{multi_head_attention.1} parent=39 // pred_region
          %p341 = scmp.lt.s32.totalorder %s26, 1
          %s342 = scalar_select %p341, %s26, 1
          %s343 = smul.addr %s342, 4
          %s344 = scalar_lea.vmem %s1, %s343
        $region48: #{multi_head_attention.1} parent=39 // pred_fallthru
          _
        // Predicated region
        $region49: #{multi_head_attention.1} parent=39 // pred_check
          %p345 = pneg %p105
        $region50: #{multi_head_attention.1} parent=39 // pred_check_branch
          %347 = sbr.rel (%p345) target = $region52
        $region51: #{multi_head_attention.1} parent=39 // pred_region
          %p348 = scmp.lt.s32.totalorder %s26, 1
          %s349 = scalar_select %p348, %s26, 1
          %s350 = smul.addr %s349, 4
          %s351 = scalar_lea.vmem %s2, %s350
        $region52: #{multi_head_attention.1} parent=39 // pred_fallthru
          _
        // Predicated region
        $region53: #{multi_head_attention.1} parent=39 // pred_check
          %p352 = pneg %p257
        $region54: #{multi_head_attention.1} parent=39 // pred_check_branch
          %354 = sbr.rel (%p352) target = $region56
        $region55: #{multi_head_attention.1} parent=39 // pred_region
          %p355 = scmp.lt.s32.totalorder %s26, 1
          %s356 = scalar_select %p355, %s26, 1
          %s357 = scalar_lea.vmem %s9, %s356
        $region56: #{multi_head_attention.1} parent=39 // pred_fallthru
          _
      $region40: #{multi_head_attention.1} parent=5 // pred_fallthru
        _
      %p358 = scmp.le.s32.totalorder 1, %s19
      %p359 = scmp.lt.s32.totalorder %s19, 3
      %p360 = pnand %p358, %p359
      %p361 = pneg %p360
      // Predicated region
      $region57: #{multi_head_attention.1} parent=5 // pred_check
        _
      $region58: #{multi_head_attention.1} parent=5 // pred_check_branch
        %363 = sbr.rel (%p360) target = $region60
      $region59: #{multi_head_attention.1} parent=5 // pred_region
        %s364 = ssub.s32 %s19, 1
        %p365 = scmp.lt.s32.totalorder %s28, 1
        %s366 = scalar_select %p365, %s28, 1
        %p367 = scmp.lt.s32.totalorder %s29, 0
        %s368 = scalar_select %p367, %s29, 0
        %s369 = sadd.s32 %s368, %s366
        %s370 = smul.addr %s369, 4
        %s371 = scalar_lea.vmem %s0, %s370
        %p372 = pneg %p59
        %p373 = pneg %p56
        %p374 = scmp.lt.s32.totalorder %s28, 1
        %s375 = scalar_select %p374, %s28, 1
        %s376 = smul.addr %s375, 4
        %s377 = scalar_lea.vmem %s1, %s376
        %p378 = pneg %p85
        %p379 = pneg %p82
        %p380 = scmp.lt.s32.totalorder %s28, 1
        %s381 = scalar_select %p380, %s28, 1
        %s382 = smul.addr %s381, 4
        %s383 = scalar_lea.vmem %s2, %s382
        %p384 = pneg %p111
        %p385 = pneg %p108
        %p386 = pneg %p132
        %p387 = pneg %p129
        %p388 = pneg %p153
        %p389 = pneg %p150
        %p390 = pneg %p174
        %p391 = pneg %p171
        %p392 = pneg %p195
        %p393 = pneg %p192
        %p394 = pneg %p216
        %p395 = pneg %p213
        %p396 = pneg %p237
        %p397 = pneg %p234
        %p398 = scmp.lt.s32.totalorder %s28, 1
        %s399 = scalar_select %p398, %s28, 1
        %s400 = scalar_lea.vmem %s9, %s399
        %p401 = pneg %p263
        %p402 = pneg %p260
        %p403 = pneg %p291
        %p404 = pneg %p288
        %s405 = sand.u32 %s278, 1
        %s406 = scalar_lea.sflag [#allocation5], %s405
        %s407 = sand.u32 %s278, 1
        %s408 = smul.addr %s407, 8
        %s409 = scalar_lea.vmem [#allocation4], %s408
        %p410 = scmp.lt.s32.totalorder %s28, 1
        %s411 = scalar_select %p410, %s28, 1
        %p412 = scmp.lt.s32.totalorder %s29, 0
        %s413 = scalar_select %p412, %s29, 0
        %s414 = sadd.s32 %s413, %s411
        %s415 = smul.addr %s414, 4
        %s416 = scalar_lea.vmem %s0, %s415
        %p417 = scmp.lt.s32.totalorder %s28, 1
        %s418 = scalar_select %p417, %s28, 1
        %s419 = smul.addr %s418, 4
        %s420 = scalar_lea.vmem %s1, %s419
        %p421 = scmp.lt.s32.totalorder %s28, 1
        %s422 = scalar_select %p421, %s28, 1
        %s423 = smul.addr %s422, 4
        %s424 = scalar_lea.vmem %s2, %s423
        %p425 = scmp.lt.s32.totalorder %s28, 1
        %s426 = scalar_select %p425, %s28, 1
        %s427 = scalar_lea.vmem %s9, %s426
        %p429 = scmp.eq.s32.totalorder %s29, 0
        // Predicated region
        $region61: #{multi_head_attention.1} parent=59 // pred_check
          %p430 = pneg %p429
        $region62: #{multi_head_attention.1} parent=59 // pred_check_branch
          %432 = sbr.rel (%p430) target = $region64
        $region63: #{multi_head_attention.1} parent=59 // pred_region
          %v433 = vld [vmem:[%s420] sm:$0xf]
          %v434 = vld [vmem:[%s5] sm:$0xf]
          %v435 = vld [vmem:[%s5 + $0x4] sm:$0xf]
          %v436 = vld [vmem:[%s5 + $0x8] sm:$0xf]
          %v437 = vld [vmem:[%s5 + $0xc] sm:$0xf]
          %v438 = vld [vmem:[%s6] sm:$0x1]
          %v440 = vperm.slane %v438, 0
          %v446 = vunpack.c.l.b16 %v434
          %v447 = vunpack.c.l.b16 %v435
          %v448 = vunpack.c.l.b16 %v436
          %v449 = vunpack.c.l.b16 %v437
          %v450 = vpack.c.b16 %v447, %v446
          %v451 = vpack.c.b16 %v449, %v448
          %vm454 = vcmask 261120
          %v456 = vsel %vm454, %v433, 0
          %458 = vmatpush.bf16.msra.mxu0 0
          %459 = vmatpush.bf16.msra.mxu0 0
          %460 = vmatpush.bf16.msra.mxu0 0
          %461 = vmatpush.bf16.msra.mxu0 0
          %462 = vmatpush.bf16.msra.mxu0 0
          %463 = vmatpush.bf16.msra.mxu0 0
          %464 = vmatpush.bf16.msra.mxu0 %v451
          %465 = vmatpush.bf16.msra.mxu0 %v450
          %466 = vmatmul.bf16.gmra.mxu0 %v456
          %v467 = vpop.f32.mrf.mxu0
          %v468 = vadd.f32 %v440, %v467
          %v469 = vpop.f32.mrf.mxu0
          %470 = vdwg.mxu0
          %v471 = vpack.c.bf16 %v468, %v468
          %v472 = vld [vmem:[%s424] sm:$0xf]
          %v473 = vld [vmem:[%s7] sm:$0xf]
          %v474 = vld [vmem:[%s7 + $0x4] sm:$0xf]
          %v475 = vld [vmem:[%s7 + $0x8] sm:$0xf]
          %v476 = vld [vmem:[%s7 + $0xc] sm:$0xf]
          %v477 = vld [vmem:[%s8] sm:$0x1]
          %v479 = vperm.slane %v477, 0
          %v485 = vunpack.c.l.b16 %v473
          %v486 = vunpack.c.l.b16 %v474
          %v487 = vunpack.c.l.b16 %v475
          %v488 = vunpack.c.l.b16 %v476
          %v489 = vpack.c.b16 %v486, %v485
          %v490 = vpack.c.b16 %v488, %v487
          %v494 = vsel %vm454, %v472, 0
          %496 = vmatpush.bf16.msra.mxu0 0
          %497 = vmatpush.bf16.msra.mxu0 0
          %498 = vmatpush.bf16.msra.mxu0 0
          %499 = vmatpush.bf16.msra.mxu0 0
          %500 = vmatpush.bf16.msra.mxu0 0
          %501 = vmatpush.bf16.msra.mxu0 0
          %502 = vmatpush.bf16.msra.mxu0 %v490
          %503 = vmatpush.bf16.msra.mxu0 %v489
          %504 = vmatmul.bf16.gmra.mxu0 %v494
          %v505 = vpop.f32.mrf.mxu0
          %v506 = vadd.f32 %v479, %v505
          %v507 = vpop.f32.mrf.mxu0
          %508 = vdwg.mxu0
          %v509 = vpack.c.bf16 %v506, %v506
          %510 = vxpose.xlu0.c.b16.start [1/8] %v471, 128
          %511 = vxpose.xlu0.c.b16.cont [2/8] 0, 128
          %512 = vxpose.xlu0.c.b16.cont [3/8] 0, 128
          %513 = vxpose.xlu0.c.b16.cont [4/8] 0, 128
          %514 = vxpose.xlu0.c.b16.cont [5/8] 0, 128
          %515 = vxpose.xlu0.c.b16.cont [6/8] 0, 128
          %516 = vxpose.xlu0.c.b16.cont [7/8] 0, 128
          %517 = vxpose.xlu0.c.b16.end [8/8] 0, 128
          %v518 = vpop.trf.xlu0
          %v519 = vpop.trf.xlu0
          %v520 = vpop.trf.xlu0
          %v521 = vpop.trf.xlu0
          %v522 = vpop.trf.xlu0
          %v523 = vpop.trf.xlu0
          %v524 = vpop.trf.xlu0
          %v525 = vpop.trf.xlu0
          %v528 = vunpack.c.l.b16 %v518
          %v529 = vunpack.c.h.b16 %v518
          %v530 = vunpack.c.l.b16 %v519
          %v531 = vunpack.c.h.b16 %v519
          %v532 = vpack.c.b16 %v528, %v528
          %v533 = vpack.c.b16 %v529, %v529
          %v534 = vpack.c.b16 %v530, %v530
          %v535 = vpack.c.b16 %v531, %v531
          %vm540 = vcmask 60416
          %541 = vst.msk [vmem:[#allocation2] sm:$0xf] %vm540, %v532
          %542 = vst.msk [vmem:[#allocation2 + $0x4] sm:$0xf] %vm540, %v533
          %543 = vst.msk [vmem:[#allocation2 + $0x8] sm:$0xf] %vm540, %v534
          %544 = vst.msk [vmem:[#allocation2 + $0xc] sm:$0xf] %vm540, %v535
          %vm545 = vcmask 257024
          %546 = vst.msk [vmem:[#allocation3] sm:$0xf] %vm545, %v509
        $region64: #{multi_head_attention.1} parent=59 // pred_fallthru
          _
        %v547 = vld [vmem:[%s416] sm:$0xf]
        %v548 = vld [vmem:[%s3] sm:$0xf]
        %v549 = vld [vmem:[%s3 + $0x4] sm:$0xf]
        %v550 = vld [vmem:[%s3 + $0x8] sm:$0xf]
        %v551 = vld [vmem:[%s3 + $0xc] sm:$0xf]
        %v552 = vld [vmem:[%s4] sm:$0x1]
        %v554 = vperm.slane %v552, 0
        %v560 = vunpack.c.l.b16 %v548
        %v561 = vunpack.c.l.b16 %v549
        %v562 = vunpack.c.l.b16 %v550
        %v563 = vunpack.c.l.b16 %v551
        %v564 = vpack.c.b16 %v561, %v560
        %v565 = vpack.c.b16 %v563, %v562
        %vm568 = vcmask 261120
        %v570 = vsel %vm568, %v547, 0
        %572 = vmatpush.bf16.msra.mxu0 0
        %573 = vmatpush.bf16.msra.mxu0 0
        %574 = vmatpush.bf16.msra.mxu0 0
        %575 = vmatpush.bf16.msra.mxu0 0
        %576 = vmatpush.bf16.msra.mxu0 0
        %577 = vmatpush.bf16.msra.mxu0 0
        %578 = vmatpush.bf16.msra.mxu0 %v565
        %579 = vmatpush.bf16.msra.mxu0 %v564
        %580 = vmatmul.bf16.gmra.mxu0 %v570
        %v581 = vpop.f32.mrf.mxu0
        %v582 = vadd.f32 %v554, %v581
        %v583 = vpop.f32.mrf.mxu0
        %584 = vdwg.mxu0
        %v585 = vpack.c.bf16 %v582, %v582
        %v586 = vld [vmem:[%s427] sm:$0x1]
        %v587 = vld [vmem:[#allocation2] sm:$0xf]
        %v588 = vld [vmem:[#allocation3] sm:$0xf]
        %v590 = vperm.slane %v586, 0
        %vm592 = vcmask 64512
        %v594 = vsel %vm592, %v585, 0
        %vm596 = vcmask 1043456
        %v598 = vsel %vm596, %v587, 0
        %600 = vmatpush.bf16.msra.mxu0 0
        %601 = vmatpush.bf16.msra.mxu0 0
        %602 = vmatpush.bf16.msra.mxu0 0
        %603 = vmatpush.bf16.msra.mxu0 0
        %604 = vmatpush.bf16.msra.mxu0 0
        %605 = vmatpush.bf16.msra.mxu0 0
        %606 = vmatpush.bf16.msra.mxu0 0
        %607 = vmatpush.bf16.msra.mxu0 %v598
        %608 = vmatmul.bf16.gmra.mxu0 %v594
        %v609 = vpop.f32.mrf.mxu0
        %v610 = vadd.f32 %v590, %v609
        %v611 = vpop.f32.mrf.mxu0
        %612 = vdwg.mxu0
        %v613 = vsel %vm592, %v610, -inf
        %614 = vmax.xlane.f32.xlu0 %v613
        %v615 = vpop.xlane.xlu0 %614
        %v616 = vsub.f32 %v610, %v615
        %v617 = vmul.f32 %v616, 1.442695
        %v618 = vpow.pop %v617
        %v619 = vsel %vm592, %v618, 0.0
        %620 = vadd.xlane.f32.xlu0 %v619
        %v621 = vpop.xlane.xlu0 %620
        %v622 = vrcp.pop %v621
        %v623 = vmul.f32 %v618, %v622
        %v624 = vpack.c.bf16 %v623, %v623
        %v626 = vsel %vm592, %v624, 0
        %v629 = vsel %vm596, %v588, 0
        %631 = vmatpush.bf16.msra.mxu0 0
        %632 = vmatpush.bf16.msra.mxu0 0
        %633 = vmatpush.bf16.msra.mxu0 0
        %634 = vmatpush.bf16.msra.mxu0 0
        %635 = vmatpush.bf16.msra.mxu0 0
        %636 = vmatpush.bf16.msra.mxu0 0
        %637 = vmatpush.bf16.msra.mxu0 0
        %638 = vmatpush.bf16.msra.mxu0 %v629
        %639 = vmatmul.bf16.gmra.mxu0 %v626
        %v640 = vpop.f32.mrf.mxu0
        %v641 = vadd.f32 0.0, %v640
        %v642 = vpop.f32.mrf.mxu0
        %643 = vdwg.mxu0
        %644 = vst.msk [vmem:[%s409] sm:$0xff] %vm592, %v641
        %v645 = vld [vmem:[#allocation2 + $0x4] sm:$0xf]
        %v646 = vld [vmem:[#allocation3] sm:$0xf]
        %v648 = vunpack.c.l.b16 %v585
        %v649 = vpack.c.b16 %v648, %v648
        %650 = vrot.lane.b32.xlu0 %v649, 120
        %v651 = vpop.permute.xlu0 %650
        %v653 = vsel %vm592, %v651, 0
        %v656 = vsel %vm596, %v645, 0
        %658 = vmatpush.bf16.msra.mxu0 0
        %659 = vmatpush.bf16.msra.mxu0 0
        %660 = vmatpush.bf16.msra.mxu0 0
        %661 = vmatpush.bf16.msra.mxu0 0
        %662 = vmatpush.bf16.msra.mxu0 0
        %663 = vmatpush.bf16.msra.mxu0 0
        %664 = vmatpush.bf16.msra.mxu0 0
        %665 = vmatpush.bf16.msra.mxu0 %v656
        %666 = vmatmul.bf16.gmra.mxu0 %v653
        %v667 = vpop.f32.mrf.mxu0
        %v668 = vadd.f32 %v590, %v667
        %v669 = vpop.f32.mrf.mxu0
        %670 = vdwg.mxu0
        %v671 = vsel %vm592, %v668, -inf
        %672 = vmax.xlane.f32.xlu0 %v671
        %v673 = vpop.xlane.xlu0 %672
        %v674 = vsub.f32 %v668, %v673
        %v675 = vmul.f32 %v674, 1.442695
        %v676 = vpow.pop %v675
        %v677 = vsel %vm592, %v676, 0.0
        %678 = vadd.xlane.f32.xlu0 %v677
        %v679 = vpop.xlane.xlu0 %678
        %v680 = vrcp.pop %v679
        %v681 = vmul.f32 %v676, %v680
        %v682 = vpack.c.bf16 %v681, %v681
        %v684 = vunpack.c.l.b16 %v646
        %v685 = vpack.c.b16 %v684, %v684
        %686 = vrot.lane.b32.xlu0 %v685, 120
        %v687 = vpop.permute.xlu0 %686
        %v689 = vsel %vm592, %v682, 0
        %v692 = vsel %vm596, %v687, 0
        %694 = vmatpush.bf16.msra.mxu0 0
        %695 = vmatpush.bf16.msra.mxu0 0
        %696 = vmatpush.bf16.msra.mxu0 0
        %697 = vmatpush.bf16.msra.mxu0 0
        %698 = vmatpush.bf16.msra.mxu0 0
        %699 = vmatpush.bf16.msra.mxu0 0
        %700 = vmatpush.bf16.msra.mxu0 0
        %701 = vmatpush.bf16.msra.mxu0 %v692
        %702 = vmatmul.bf16.gmra.mxu0 %v689
        %v703 = vpop.f32.mrf.mxu0
        %v704 = vadd.f32 0.0, %v703
        %v705 = vpop.f32.mrf.mxu0
        %706 = vdwg.mxu0
        %708 = vrot.lane.b32.xlu0 %v704, 8
        %v709 = vpop.permute.xlu0 %708
        %vm711 = vcmask 130112
        %712 = vst.msk [vmem:[%s409] sm:$0xff] %vm711, %v709
        %v713 = vld [vmem:[#allocation2 + $0x8] sm:$0xf]
        %v714 = vld [vmem:[#allocation3] sm:$0xf]
        %715 = vrot.lane.b32.xlu0 %v649, 112
        %v716 = vpop.permute.xlu0 %715
        %v718 = vsel %vm592, %v716, 0
        %v721 = vsel %vm596, %v713, 0
        %723 = vmatpush.bf16.msra.mxu0 0
        %724 = vmatpush.bf16.msra.mxu0 0
        %725 = vmatpush.bf16.msra.mxu0 0
        %726 = vmatpush.bf16.msra.mxu0 0
        %727 = vmatpush.bf16.msra.mxu0 0
        %728 = vmatpush.bf16.msra.mxu0 0
        %729 = vmatpush.bf16.msra.mxu0 0
        %730 = vmatpush.bf16.msra.mxu0 %v721
        %731 = vmatmul.bf16.gmra.mxu0 %v718
        %v732 = vpop.f32.mrf.mxu0
        %v733 = vadd.f32 %v590, %v732
        %v734 = vpop.f32.mrf.mxu0
        %735 = vdwg.mxu0
        %v736 = vsel %vm592, %v733, -inf
        %737 = vmax.xlane.f32.xlu0 %v736
        %v738 = vpop.xlane.xlu0 %737
        %v739 = vsub.f32 %v733, %v738
        %v740 = vmul.f32 %v739, 1.442695
        %v741 = vpow.pop %v740
        %v742 = vsel %vm592, %v741, 0.0
        %743 = vadd.xlane.f32.xlu0 %v742
        %v744 = vpop.xlane.xlu0 %743
        %v745 = vrcp.pop %v744
        %v746 = vmul.f32 %v741, %v745
        %v747 = vpack.c.bf16 %v746, %v746
        %v749 = vunpack.c.l.b16 %v714
        %v750 = vpack.c.b16 %v749, %v749
        %751 = vrot.lane.b32.xlu0 %v750, 112
        %v752 = vpop.permute.xlu0 %751
        %v754 = vsel %vm592, %v747, 0
        %v757 = vsel %vm596, %v752, 0
        %759 = vmatpush.bf16.msra.mxu0 0
        %760 = vmatpush.bf16.msra.mxu0 0
        %761 = vmatpush.bf16.msra.mxu0 0
        %762 = vmatpush.bf16.msra.mxu0 0
        %763 = vmatpush.bf16.msra.mxu0 0
        %764 = vmatpush.bf16.msra.mxu0 0
        %765 = vmatpush.bf16.msra.mxu0 0
        %766 = vmatpush.bf16.msra.mxu0 %v757
        %767 = vmatmul.bf16.gmra.mxu0 %v754
        %v768 = vpop.f32.mrf.mxu0
        %v769 = vadd.f32 0.0, %v768
        %v770 = vpop.f32.mrf.mxu0
        %771 = vdwg.mxu0
        %773 = vrot.lane.b32.xlu0 %v769, 16
        %v774 = vpop.permute.xlu0 %773
        %vm776 = vcmask 195712
        %777 = vst.msk [vmem:[%s409] sm:$0xff] %vm776, %v774
        %v778 = vld [vmem:[#allocation2 + $0xc] sm:$0xf]
        %v779 = vld [vmem:[#allocation3] sm:$0xf]
        %780 = vrot.lane.b32.xlu0 %v649, 104
        %v781 = vpop.permute.xlu0 %780
        %v783 = vsel %vm592, %v781, 0
        %v786 = vsel %vm596, %v778, 0
        %788 = vmatpush.bf16.msra.mxu0 0
        %789 = vmatpush.bf16.msra.mxu0 0
        %790 = vmatpush.bf16.msra.mxu0 0
        %791 = vmatpush.bf16.msra.mxu0 0
        %792 = vmatpush.bf16.msra.mxu0 0
        %793 = vmatpush.bf16.msra.mxu0 0
        %794 = vmatpush.bf16.msra.mxu0 0
        %795 = vmatpush.bf16.msra.mxu0 %v786
        %796 = vmatmul.bf16.gmra.mxu0 %v783
        %v797 = vpop.f32.mrf.mxu0
        %v798 = vadd.f32 %v590, %v797
        %v799 = vpop.f32.mrf.mxu0
        %800 = vdwg.mxu0
        %v801 = vsel %vm592, %v798, -inf
        %802 = vmax.xlane.f32.xlu0 %v801
        %v803 = vpop.xlane.xlu0 %802
        %v804 = vsub.f32 %v798, %v803
        %v805 = vmul.f32 %v804, 1.442695
        %v806 = vpow.pop %v805
        %v807 = vsel %vm592, %v806, 0.0
        %808 = vadd.xlane.f32.xlu0 %v807
        %v809 = vpop.xlane.xlu0 %808
        %v810 = vrcp.pop %v809
        %v811 = vmul.f32 %v806, %v810
        %v812 = vpack.c.bf16 %v811, %v811
        %v814 = vunpack.c.l.b16 %v779
        %v815 = vpack.c.b16 %v814, %v814
        %816 = vrot.lane.b32.xlu0 %v815, 104
        %v817 = vpop.permute.xlu0 %816
        %v819 = vsel %vm592, %v812, 0
        %v822 = vsel %vm596, %v817, 0
        %824 = vmatpush.bf16.msra.mxu0 0
        %825 = vmatpush.bf16.msra.mxu0 0
        %826 = vmatpush.bf16.msra.mxu0 0
        %827 = vmatpush.bf16.msra.mxu0 0
        %828 = vmatpush.bf16.msra.mxu0 0
        %829 = vmatpush.bf16.msra.mxu0 0
        %830 = vmatpush.bf16.msra.mxu0 0
        %831 = vmatpush.bf16.msra.mxu0 %v822
        %832 = vmatmul.bf16.gmra.mxu0 %v819
        %v833 = vpop.f32.mrf.mxu0
        %v834 = vadd.f32 0.0, %v833
        %v835 = vpop.f32.mrf.mxu0
        %836 = vdwg.mxu0
        %838 = vrot.lane.b32.xlu0 %v834, 24
        %v839 = vpop.permute.xlu0 %838
        %vm841 = vcmask 261312
        %842 = vst.msk [vmem:[%s409] sm:$0xff] %vm841, %v839
        %s843 = sand.u32 %s278, 1
        %s844 = scalar_lea.sflag [#allocation5], %s843
        %s845 = sand.u32 %s278, 1
        %s846 = smul.addr %s845, 8
        %s847 = scalar_lea.vmem [#allocation4], %s846
        // Predicated region
        $region65: #{multi_head_attention.1} parent=59 // pred_check
          %p848 = pneg %p288
        $region66: #{multi_head_attention.1} parent=59 // pred_check_branch
          %850 = sbr.rel (%p848) target = $region68
        $region67: #{multi_head_attention.1} parent=59 // pred_region
          %852 = vsyncadd %s844, 0
          %s853 = sadd.s32 %s29, %s28
          %s854 = smul.addr %s853, 8
          %s855 = scalar_lea.hbm %s10, %s854
          %s857 = sshll.u32 %s847, 4
          %s858 = int_to_ptr.vmem [resolvable:$true] %s857
          %s859 = sshll.u32 %s855, 4
          %s860 = int_to_ptr.hbm [resolvable:$true] %s859
          %862 = dma.vmem_to_hbm [thread:$0]  %s858, 128, %s860, %s844
        $region68: #{multi_head_attention.1} parent=59 // pred_fallthru
          _
      $region60: #{multi_head_attention.1} parent=5 // pred_fallthru
        _
      %p863 = scmp.le.s32.totalorder 2, %s19
      // Predicated region
      $region69: #{multi_head_attention.1} parent=5 // pred_check
        %p864 = pneg %p863
      $region70: #{multi_head_attention.1} parent=5 // pred_check_branch
        %866 = sbr.rel (%p864) target = $region72
      $region71: #{multi_head_attention.1} parent=5 // pred_region
        %s867 = ssub.s32 %s19, 2
        // Predicated region
        $region73: #{multi_head_attention.1} parent=71 // pred_check
          %p868 = pneg %p294
        $region74: #{multi_head_attention.1} parent=71 // pred_check_branch
          %870 = sbr.rel (%p868) target = $region76
        $region75: #{multi_head_attention.1} parent=71 // pred_region
          %s871 = sand.u32 %s279, 1
          %s872 = scalar_lea.sflag [#allocation5], %s871
          %s873 = sand.u32 %s279, 1
          %s874 = smul.addr %s873, 8
          %s875 = scalar_lea.vmem [#allocation4], %s874
          %877 = dma.done %s872, 128
        $region76: #{multi_head_attention.1} parent=71 // pred_fallthru
          _
      $region72: #{multi_head_attention.1} parent=5 // pred_fallthru
        _
    $region6: #{multi_head_attention.1} parent=1 // loop_footer
      %s23 = sadd.s32 1, %s19
    $region7: #{multi_head_attention.1} parent=1 // loop_footer_branch
      %18 = sbr.rel target = $region3
    $region8: #{multi_head_attention.1} parent=1 // loop_exit
      _
    %878 = vsyncpa [#allocation5], 1
    %s879 = scalar_lea.sflag [#allocation5], 1
    %880 = vsyncpa %s879, 1

</llo_original>
